<compile_context>
chip_gen: v5e
topology: v5e:2x2
jax: 0.10.0
libtpu: 0.0.40
codegen_flags: <defaults>
</compile_context>

<pallas_src>
import jax
import jax.numpy as jnp
from jax.experimental import pallas as pl
from jax.experimental.pallas import tpu as pltpu


def _round_up(v, m):
    return ((v + m - 1) // m) * m


def _vmem_limit_bytes():
    """3/4 of physical per-core VMEM; safe fallback if the query fails."""
    try:
        cap = pltpu.get_tpu_info().vmem_capacity_bytes
    except Exception:
        cap = 64 * 1024 * 1024          # conservative (v7x-sized) fallback
    return (int(cap) * 3) // 4


def _fusion_kernel(x_ref, f_ref, wx_ref, wf_ref, b_ref, o_ref):
    d_in = o_ref.shape[-1]              # natural output width
    d_in_p = wx_ref.shape[-1] // 2      # lane-padded per-gate width
    w_dtype = wx_ref.dtype              # MXU compute dtype (bf16 or f32)

    x_in = x_ref[...]                   # [TM, d_in]   natural dtype
    f_in = f_ref[...]                   # [TM, d_f]    natural dtype

    # One fused MXU pass per activation source, f32 accumulation.
    lin = (jnp.dot(x_in.astype(w_dtype), wx_ref[...],
                   preferred_element_type=jnp.float32)
           + jnp.dot(f_in.astype(w_dtype), wf_ref[...],
                     preferred_element_type=jnp.float32)
           + b_ref[...])                # [TM, 2*d_in_p]

    # Static slices; the g half starts at a 128-aligned lane offset.
    r = jnp.tanh(lin[:, :d_in])
    g = jax.nn.sigmoid(lin[:, d_in_p:d_in_p + d_in])

    x32 = x_in.astype(jnp.float32)
    o = x32 + g * (r - x32)             # == g*r + (1-g)*x, one fewer VPU op
    o_ref[...] = o.astype(o_ref.dtype)


def prepare_fusion_weights(wr, br, wg, bg, d_in, *, compute_dtype=jnp.bfloat16):
    """One-time weight prep (hoisted out of the per-call path).

    wr, wg: PyTorch Linear weights [out=d_in, in=d_in+d_f]; br, bg: [d_in].
    Returns (wx_cat [d_in, 2*d_in_p], wf_cat [d_f, 2*d_in_p], b_cat [1, 2*d_in_p]).
    Only the N (output) axis is padded to a multiple of 128; K is untouched.
    """
    d_in_p = max(_round_up(d_in, 128), 128)
    pad_n = d_in_p - d_in

    def split(w):
        w_x = w[:, :d_in].T                                  # [d_in, d_in]
        w_f = w[:, d_in:].T                                  # [d_f,  d_in]
        if pad_n:
            w_x = jnp.pad(w_x, ((0, 0), (0, pad_n)))
            w_f = jnp.pad(w_f, ((0, 0), (0, pad_n)))
        return w_x, w_f

    wr_x, wr_f = split(wr)
    wg_x, wg_f = split(wg)
    wx_cat = jnp.concatenate([wr_x, wg_x], axis=1).astype(compute_dtype)
    wf_cat = jnp.concatenate([wr_f, wg_f], axis=1).astype(compute_dtype)
    b_cat = jnp.concatenate([jnp.pad(br, (0, pad_n)),
                             jnp.pad(bg, (0, pad_n))])
    b_cat = b_cat.reshape(1, 2 * d_in_p).astype(jnp.float32)
    return wx_cat, wf_cat, b_cat


def fusion_cell_apply(x, f, wx_cat, wf_cat, b_cat, *, out_dtype=None, tm=1024):
    """FusionCell forward with pre-prepared weights.

    x: [B, T, d_in], f: [B, T, d_f] -> [B, T, d_in] (dtype = out_dtype or x.dtype)
    """
    B, T, d_in = x.shape
    d_f = f.shape[-1]
    M = B * T
    d_in_p = wx_cat.shape[-1] // 2
    out_dtype = x.dtype if out_dtype is None else out_dtype

    # Pure reshapes only -- no padding, no casting, no extra HBM passes.
    x2 = x.reshape(M, d_in)
    f2 = f.reshape(M, d_f)

    # Row tile: multiple of 8; capped so the grid has >= 2 steps (v7x 2-TC
    # sharding via the "parallel" axis, harmless on v5e/v6e).
    tm_eff = max(8, min(tm, _round_up(pl.cdiv(M, 2), 8)))
    grid = (pl.cdiv(M, tm_eff),)

    resident = dict(pipeline_mode=pl.Buffered(1))   # constant blocks: 1 buffer

    out = pl.pallas_call(
        _fusion_kernel,
        out_shape=jax.ShapeDtypeStruct((M, d_in), out_dtype),
        grid=grid,
        in_specs=[
            pl.BlockSpec((tm_eff, d_in), lambda i: (i, 0)),            # x tile
            pl.BlockSpec((tm_eff, d_f), lambda i: (i, 0)),             # f tile
            pl.BlockSpec((d_in, 2 * d_in_p), lambda i: (0, 0), **resident),  # Wx
            pl.BlockSpec((d_f, 2 * d_in_p), lambda i: (0, 0), **resident),   # Wf
            pl.BlockSpec((1, 2 * d_in_p), lambda i: (0, 0), **resident),     # bias
        ],
        out_specs=pl.BlockSpec((tm_eff, d_in), lambda i: (i, 0)),
        compiler_params=pltpu.CompilerParams(
            dimension_semantics=("parallel",),
            vmem_limit_bytes=_vmem_limit_bytes(),
        ),
    )(x2, f2, wx_cat, wf_cat, b_cat)

    return out.reshape(B, T, d_in)


def fusion_cell(x, f, wr, br, wg, bg, *, compute_dtype=jnp.bfloat16,
                out_dtype=None, tm=1024):
    """Convenience wrapper: prep weights + apply (use prepare_* once in real use)."""
    d_in = x.shape[-1]
    wx_cat, wf_cat, b_cat = prepare_fusion_weights(
        wr, br, wg, bg, d_in, compute_dtype=compute_dtype)
    return fusion_cell_apply(x, f, wx_cat, wf_cat, b_cat,
                             out_dtype=out_dtype, tm=tm)


def _reference(x, f, wr, br, wg, bg):
    xf = jnp.concatenate([x, f], axis=2)
    r = jnp.tanh(jnp.einsum("btd,od->bto", xf, wr) + br)
    g = jax.nn.sigmoid(jnp.einsum("btd,od->bto", xf, wg) + bg)
    return g * r + (1.0 - g) * x


if __name__ == "__main__":
    B, T = 2, 8
    input_size, f_size = 32, 32
    D = input_size + f_size

    key = jax.random.PRNGKey(0)
    kx, kf, kwr, kbr, kwg, kbg = jax.random.split(key, 6)

    x = jax.random.normal(kx, (B, T, input_size), dtype=jnp.float32)
    f = jax.random.normal(kf, (B, T, f_size), dtype=jnp.float32)

    # PyTorch Linear init layout: weight [out, in], bias [out].
    bound = 1.0 / (D ** 0.5)
    wr = jax.random.uniform(kwr, (input_size, D), minval=-bound, maxval=bound, dtype=jnp.float32)
    br = jax.random.uniform(kbr, (input_size,), minval=-bound, maxval=bound, dtype=jnp.float32)
    wg = jax.random.uniform(kwg, (input_size, D), minval=-bound, maxval=bound, dtype=jnp.float32)
    bg = jax.random.uniform(kbg, (input_size,), minval=-bound, maxval=bound, dtype=jnp.float32)

    ref = _reference(x, f, wr, br, wg, bg)

    # f32 compute path: exact-ish check against the reference.
    out_f32 = fusion_cell(x, f, wr, br, wg, bg, compute_dtype=jnp.float32)
    out_f32 = jax.block_until_ready(out_f32)
    assert out_f32.shape == (B, T, input_size)
    assert out_f32.dtype == x.dtype
    assert jnp.allclose(out_f32, ref, atol=1e-5, rtol=1e-5)

    # bf16 MXU path with the weight prep hoisted out of the per-call path and
    # the forward jitted (the production configuration).
    wx_cat, wf_cat, b_cat = prepare_fusion_weights(
        wr, br, wg, bg, input_size, compute_dtype=jnp.bfloat16)
    fwd = jax.jit(lambda xx, ff: fusion_cell_apply(xx, ff, wx_cat, wf_cat, b_cat))
    out_bf16 = jax.block_until_ready(fwd(x, f))
    assert out_bf16.shape == (B, T, input_size)
    assert jnp.allclose(out_bf16, ref, atol=5e-2, rtol=5e-2)

    print("KERNEL_OK")
</pallas_src>

<mosaic_0001>
module attributes {stable_mosaic.version = 11 : i64} {
  func.func @_fusion_kernel(%arg0: i32, %arg1: memref<8x32xf32, #tpu.memory_space<vmem>>, %arg2: memref<8x32xf32, #tpu.memory_space<vmem>>, %arg3: memref<32x256xf32, #tpu.memory_space<vmem>>, %arg4: memref<32x256xf32, #tpu.memory_space<vmem>>, %arg5: memref<1x256xf32, #tpu.memory_space<vmem>>, %arg6: memref<8x32xf32, #tpu.memory_space<vmem>>) attributes {dimension_semantics = [#tpu.dimension_semantics<parallel>], iteration_bounds = array<i64: 2>, scalar_prefetch = 0 : i64, scratch_operands = 0 : i64, tpu.core_type = #tpu.core_type<tc>, window_params = [{transform_indices = @transform_0, window_bounds = array<i64: 8, 32>}, {transform_indices = @transform_1, window_bounds = array<i64: 8, 32>}, {pipeline_mode = #tpu.pipeline_mode<synchronous>, transform_indices = @transform_2, window_bounds = array<i64: 32, 256>}, {pipeline_mode = #tpu.pipeline_mode<synchronous>, transform_indices = @transform_3, window_bounds = array<i64: 32, 256>}, {pipeline_mode = #tpu.pipeline_mode<synchronous>, transform_indices = @transform_4, window_bounds = array<i64: 1, 256>}, {transform_indices = @transform_5, window_bounds = array<i64: 8, 32>}]} {
    %c0 = arith.constant 0 : index
    %c0_0 = arith.constant 0 : index
    %0 = vector.load %arg1[%c0, %c0_0] : memref<8x32xf32, #tpu.memory_space<vmem>>, vector<8x32xf32>
    %c0_1 = arith.constant 0 : index
    %c0_2 = arith.constant 0 : index
    %1 = vector.load %arg2[%c0_1, %c0_2] : memref<8x32xf32, #tpu.memory_space<vmem>>, vector<8x32xf32>
    %c0_3 = arith.constant 0 : index
    %c0_4 = arith.constant 0 : index
    %2 = vector.load %arg3[%c0_3, %c0_4] : memref<32x256xf32, #tpu.memory_space<vmem>>, vector<32x256xf32>
    %cst = arith.constant dense<0.000000e+00> : vector<8x256xf32>
    %3 = tpu.matmul %0, %2, %cst {dimension_numbers = #tpu.dot_dimension_numbers<[1], [0], [0], [1], [0, 0, 1, 1], [], []>} : vector<8x32xf32>, vector<32x256xf32>, vector<8x256xf32> -> vector<8x256xf32>
    %c0_5 = arith.constant 0 : index
    %c0_6 = arith.constant 0 : index
    %4 = vector.load %arg4[%c0_5, %c0_6] : memref<32x256xf32, #tpu.memory_space<vmem>>, vector<32x256xf32>
    %cst_7 = arith.constant dense<0.000000e+00> : vector<8x256xf32>
    %5 = tpu.matmul %1, %4, %cst_7 {dimension_numbers = #tpu.dot_dimension_numbers<[1], [0], [0], [1], [0, 0, 1, 1], [], []>} : vector<8x32xf32>, vector<32x256xf32>, vector<8x256xf32> -> vector<8x256xf32>
    %6 = arith.addf %3, %5 : vector<8x256xf32>
    %c0_8 = arith.constant 0 : index
    %c0_9 = arith.constant 0 : index
    %7 = vector.load %arg5[%c0_8, %c0_9] : memref<1x256xf32, #tpu.memory_space<vmem>>, vector<1x256xf32>
    %8 = vector.broadcast %7 : vector<1x256xf32> to vector<8x256xf32>
    %9 = arith.addf %6, %8 : vector<8x256xf32>
    %10 = vector.extract_strided_slice %9 {offsets = [0, 0], sizes = [8, 32], strides = [1, 1]} : vector<8x256xf32> to vector<8x32xf32>
    %11 = math.tanh %10 : vector<8x32xf32>
    %12 = vector.extract_strided_slice %9 {offsets = [0, 128], sizes = [8, 32], strides = [1, 1]} : vector<8x256xf32> to vector<8x32xf32>
    %13 = arith.negf %12 : vector<8x32xf32>
    %14 = math.exp %13 : vector<8x32xf32>
    %cst_10 = arith.constant 1.000000e+00 : f32
    %15 = vector.broadcast %cst_10 : f32 to vector<8x32xf32>
    %16 = arith.addf %15, %14 : vector<8x32xf32>
    %17 = arith.divf %15, %16 : vector<8x32xf32>
    %18 = arith.subf %11, %0 : vector<8x32xf32>
    %19 = arith.mulf %17, %18 : vector<8x32xf32>
    %20 = arith.addf %0, %19 : vector<8x32xf32>
    %c0_11 = arith.constant 0 : index
    %c0_12 = arith.constant 0 : index
    %21 = vector.load %arg6[%c0_11, %c0_12] : memref<8x32xf32, #tpu.memory_space<vmem>>, vector<8x32xf32>
    tpu.vector_store %arg6[%c0_11, %c0_12], %20 {strides = array<i32>} : memref<8x32xf32, #tpu.memory_space<vmem>>, vector<8x32xf32>,
    return
  }
  func.func @transform_0(%arg0: i32) -> (i32, i32) {
    %c0_i32 = arith.constant 0 : i32
    %c0_i32_0 = arith.constant 0 : i32
    return %arg0, %c0_i32 : i32, i32
  }
  func.func @transform_1(%arg0: i32) -> (i32, i32) {
    %c0_i32 = arith.constant 0 : i32
    %c0_i32_0 = arith.constant 0 : i32
    return %arg0, %c0_i32 : i32, i32
  }
  func.func @transform_2(%arg0: i32) -> (i32, i32) {
    %c0_i32 = arith.constant 0 : i32
    %c0_i32_0 = arith.constant 0 : i32
    %c0_i32_1 = arith.constant 0 : i32
    return %c0_i32, %c0_i32_0 : i32, i32
  }
  func.func @transform_3(%arg0: i32) -> (i32, i32) {
    %c0_i32 = arith.constant 0 : i32
    %c0_i32_0 = arith.constant 0 : i32
    %c0_i32_1 = arith.constant 0 : i32
    return %c0_i32, %c0_i32_0 : i32, i32
  }
  func.func @transform_4(%arg0: i32) -> (i32, i32) {
    %c0_i32 = arith.constant 0 : i32
    %c0_i32_0 = arith.constant 0 : i32
    %c0_i32_1 = arith.constant 0 : i32
    return %c0_i32, %c0_i32_0 : i32, i32
  }
  func.func @transform_5(%arg0: i32) -> (i32, i32) {
    %c0_i32 = arith.constant 0 : i32
    %c0_i32_0 = arith.constant 0 : i32
    return %arg0, %c0_i32 : i32, i32
  }
}

</mosaic_0001>

<llo_original>
// kernel: tpu_custom_call.1
$region0: #{tpu_custom_call.1}
  #allocation0 [shape = 'u32[]', space=smem, size = 0x4, offset = 0x4, fixed_abs, tag = 'smem constant byte address 0x4 - core index']
  #allocation1 [shape = 'u32[72,128]{1,0:T(1,128)}', space=vmem, size = 0x9000, scoped, tag = 'internal scratch']
  %s0 = inlined_call_operand.hbm [shape: f32[16,32], index: 0, kind: input, shape index: {}]
  %s1 = inlined_call_operand.hbm [shape: f32[16,32], index: 1, kind: input, shape index: {}]
  %s2 = inlined_call_operand.hbm [shape: f32[32,256], index: 2, kind: input, shape index: {}]
  %s3 = inlined_call_operand.hbm [shape: f32[32,256], index: 3, kind: input, shape index: {}]
  %s4 = inlined_call_operand.vmem [shape: f32[1,256], index: 4, kind: input, shape index: {}]
  %s5 = inlined_call_operand.hbm [shape: f32[16,32], index: 5, kind: output, shape index: {}]
  %s6 = sld [smem:[#allocation0]]
  $region69: #{tpu_custom_call.1} parent=0
    _
  %s8 = ssub.s32 1, %s6
  %s9 = scalar_select 0, %s8, %s6
  $region1: #{tpu_custom_call.1} parent=0
    #allocation2 [shape = 'u8[8192]{0}', space=vmem, size = 0x2000, scoped, tag = 'input window, operand 0']
    #allocation3 [shape = 's32[2]{0}', space=sflag, size = 0x8, scoped, tag = 'scoped memory for tpu_custom_call.1']
    #allocation4 [shape = 's32[2]{0}', space=sflag, size = 0x8, scoped, tag = 'scoped memory for tpu_custom_call.1']
    #allocation5 [shape = 'u8[8192]{0}', space=vmem, size = 0x2000, scoped, tag = 'input window, operand 1']
    #allocation6 [shape = 's32[2]{0}', space=sflag, size = 0x8, scoped, tag = 'scoped memory for tpu_custom_call.1']
    #allocation7 [shape = 'u8[32768]{0}', space=vmem, size = 0x8000, scoped, tag = 'input window, operand 2, single buffered']
    #allocation8 [shape = 'u8[32768]{0}', space=vmem, size = 0x8000, scoped, tag = 'input window, operand 3, single buffered']
    #allocation9 [shape = 's32[1]{0}', space=sflag, size = 0x4, scoped, tag = 'scoped memory for tpu_custom_call.1']
    #allocation10 [shape = 'u8[8192]{0}', space=vmem, size = 0x2000, scoped, tag = 'output window, operand 0']
    %10 = vsyncpa [#allocation3], 0
    %s11 = scalar_lea.sflag [#allocation3], 1
    %12 = vsyncpa %s11, 0
    %13 = vsyncpa [#allocation6], 0
    %s14 = scalar_lea.sflag [#allocation6], 1
    %15 = vsyncpa %s14, 0
    %16 = vsyncpa [#allocation9], 0
    %17 = vsyncpa [#allocation4], 0
    %s18 = scalar_lea.sflag [#allocation4], 1
    %19 = vsyncpa %s18, 0
    loop: start=0, step=1, limit=4
    $region2: #{tpu_custom_call.1} parent=1 // loop_pre_header
      _
    $region3: #{tpu_custom_call.1} parent=1 // loop_header
      %s21 = sphi 0, %s25
      %p22 = scmp.ge.s32.totalorder %s21, 4
      %s31 = sphi 0, %s33
      %s34 = sphi 0, %s31
      %s35 = sphi 0, %s34
      %s51 = sphi 0, %s35
      %s57 = sphi 0, %s59
      %s60 = sphi 0, %s57
      %s61 = sphi 0, %s60
      %s77 = sphi 0, %s61
      %s81 = sphi 0, %s81
      %s83 = sphi 0, %s81
      %s84 = sphi 0, %s83
      %s98 = sphi 0, %s84
      %s102 = sphi 0, %s102
      %s104 = sphi 0, %s102
      %s105 = sphi 0, %s104
      %s119 = sphi 0, %s105
      %s123 = sphi 0, %s123
      %s125 = sphi 0, %s123
      %s126 = sphi 0, %s125
      %s140 = sphi 0, %s126
      %s146 = sphi 0, %s148
      %s149 = sphi 0, %s146
      %s150 = sphi 0, %s149
      %s166 = sphi 0, %s150
    $region4: #{tpu_custom_call.1} parent=1 // loop_header_branch
      %24 = sbr.rel (%p22) target = $region8
    $region5: #{tpu_custom_call.1} parent=1 // loop_body
      %s26 = ssub.s32 %s21, 1
      %s27 = ssub.s32 %s21, 2
      %s28 = sadd.s32 %s21, 1
      %s29 = ssub.s32 %s21, %s28
      %p30 = scmp.eq.s32.totalorder %s29, 0
      %s32 = sadd.s32 %s31, 1
      %s33 = scalar_select %p30, %s31, %s32
      %p36 = pneg %p30
      %p37 = scmp.eq.s32.totalorder %s21, 1
      %p38 = por %p36, %p37
      %p39 = scmp.ne.s32.totalorder %s31, %s34
      %p40 = scmp.eq.s32.totalorder %s21, 0
      %p41 = por %p39, %p40
      %p42 = scmp.ne.s32.totalorder %s31, %s34
      %p43 = scmp.eq.s32.totalorder %s26, 1
      %p44 = por %p42, %p43
      %p45 = scmp.ne.s32.totalorder %s34, %s35
      %p46 = scmp.eq.s32.totalorder %s26, 0
      %p47 = por %p45, %p46
      %p48 = scmp.ne.s32.totalorder %s34, %s35
      %p49 = scmp.eq.s32.totalorder %s27, 1
      %p50 = por %p48, %p49
      %p52 = scmp.ne.s32.totalorder %s35, %s51
      %p53 = scmp.eq.s32.totalorder %s27, 0
      %p54 = por %p52, %p53
      %s55 = ssub.s32 %s21, %s28
      %p56 = scmp.eq.s32.totalorder %s55, 0
      %s58 = sadd.s32 %s57, 1
      %s59 = scalar_select %p56, %s57, %s58
      %p62 = pneg %p56
      %p63 = scmp.eq.s32.totalorder %s21, 1
      %p64 = por %p62, %p63
      %p65 = scmp.ne.s32.totalorder %s57, %s60
      %p66 = scmp.eq.s32.totalorder %s21, 0
      %p67 = por %p65, %p66
      %p68 = scmp.ne.s32.totalorder %s57, %s60
      %p69 = scmp.eq.s32.totalorder %s26, 1
      %p70 = por %p68, %p69
      %p71 = scmp.ne.s32.totalorder %s60, %s61
      %p72 = scmp.eq.s32.totalorder %s26, 0
      %p73 = por %p71, %p72
      %p74 = scmp.ne.s32.totalorder %s60, %s61
      %p75 = scmp.eq.s32.totalorder %s27, 1
      %p76 = por %p74, %p75
      %p78 = scmp.ne.s32.totalorder %s61, %s77
      %p79 = scmp.eq.s32.totalorder %s27, 0
      %p80 = por %p78, %p79
      %s82 = sadd.s32 %s81, 1
      %p85 = scmp.eq.s32.totalorder %s21, 1
      %p86 = scmp.ne.s32.totalorder %s81, %s83
      %p87 = scmp.eq.s32.totalorder %s21, 0
      %p88 = por %p86, %p87
      %p89 = scmp.ne.s32.totalorder %s81, %s83
      %p90 = scmp.eq.s32.totalorder %s26, 1
      %p91 = por %p89, %p90
      %p92 = scmp.ne.s32.totalorder %s83, %s84
      %p93 = scmp.eq.s32.totalorder %s26, 0
      %p94 = por %p92, %p93
      %p95 = scmp.ne.s32.totalorder %s83, %s84
      %p96 = scmp.eq.s32.totalorder %s27, 1
      %p97 = por %p95, %p96
      %p99 = scmp.ne.s32.totalorder %s84, %s98
      %p100 = scmp.eq.s32.totalorder %s27, 0
      %p101 = por %p99, %p100
      %s103 = sadd.s32 %s102, 1
      %p106 = scmp.eq.s32.totalorder %s21, 1
      %p107 = scmp.ne.s32.totalorder %s102, %s104
      %p108 = scmp.eq.s32.totalorder %s21, 0
      %p109 = por %p107, %p108
      %p110 = scmp.ne.s32.totalorder %s102, %s104
      %p111 = scmp.eq.s32.totalorder %s26, 1
      %p112 = por %p110, %p111
      %p113 = scmp.ne.s32.totalorder %s104, %s105
      %p114 = scmp.eq.s32.totalorder %s26, 0
      %p115 = por %p113, %p114
      %p116 = scmp.ne.s32.totalorder %s104, %s105
      %p117 = scmp.eq.s32.totalorder %s27, 1
      %p118 = por %p116, %p117
      %p120 = scmp.ne.s32.totalorder %s105, %s119
      %p121 = scmp.eq.s32.totalorder %s27, 0
      %p122 = por %p120, %p121
      %s124 = sadd.s32 %s123, 1
      %p127 = scmp.eq.s32.totalorder %s21, 1
      %p128 = scmp.ne.s32.totalorder %s123, %s125
      %p129 = scmp.eq.s32.totalorder %s21, 0
      %p130 = por %p128, %p129
      %p131 = scmp.ne.s32.totalorder %s123, %s125
      %p132 = scmp.eq.s32.totalorder %s26, 1
      %p133 = por %p131, %p132
      %p134 = scmp.ne.s32.totalorder %s125, %s126
      %p135 = scmp.eq.s32.totalorder %s26, 0
      %p136 = por %p134, %p135
      %p137 = scmp.ne.s32.totalorder %s125, %s126
      %p138 = scmp.eq.s32.totalorder %s27, 1
      %p139 = por %p137, %p138
      %p141 = scmp.ne.s32.totalorder %s126, %s140
      %p142 = scmp.eq.s32.totalorder %s27, 0
      %p143 = por %p141, %p142
      %s144 = ssub.s32 %s21, %s28
      %p145 = scmp.eq.s32.totalorder %s144, 0
      %s147 = sadd.s32 %s146, 1
      %s148 = scalar_select %p145, %s146, %s147
      %p151 = pneg %p145
      %p152 = scmp.eq.s32.totalorder %s21, 1
      %p153 = por %p151, %p152
      %p154 = scmp.ne.s32.totalorder %s146, %s149
      %p155 = scmp.eq.s32.totalorder %s21, 0
      %p156 = por %p154, %p155
      %p157 = scmp.ne.s32.totalorder %s146, %s149
      %p158 = scmp.eq.s32.totalorder %s26, 1
      %p159 = por %p157, %p158
      %p160 = scmp.ne.s32.totalorder %s149, %s150
      %p161 = scmp.eq.s32.totalorder %s26, 0
      %p162 = por %p160, %p161
      %p163 = scmp.ne.s32.totalorder %s149, %s150
      %p164 = scmp.eq.s32.totalorder %s27, 1
      %p165 = por %p163, %p164
      %p167 = scmp.ne.s32.totalorder %s150, %s166
      %p168 = scmp.eq.s32.totalorder %s27, 0
      %p169 = por %p167, %p168
      %p170 = scmp.le.s32.totalorder 1, %s21
      %p171 = scmp.lt.s32.totalorder %s21, 3
      %p172 = pnand %p170, %p171
      %p173 = pneg %p172
      // Predicated region
      $region9: #{tpu_custom_call.1} parent=5 // pred_check
        _
      $region10: #{tpu_custom_call.1} parent=5 // pred_check_branch
        %175 = sbr.rel (%p172) target = $region12
      $region11: #{tpu_custom_call.1} parent=5 // pred_region
        %s176 = ssub.s32 %s21, 1
        // Predicated region
        $region13: #{tpu_custom_call.1} parent=11 // pred_check
          %p177 = pneg %p94
        $region14: #{tpu_custom_call.1} parent=11 // pred_check_branch
          %179 = sbr.rel (%p177) target = $region16
        $region15: #{tpu_custom_call.1} parent=11 // pred_region
          %181 = vsyncadd [#allocation6], 0
          %s182 = sshll.u32 %s2, 4
          %s183 = int_to_ptr.hbm [resolvable:$true] %s182
          %s184 = sshll.u32 [#allocation7], 4
          %s185 = int_to_ptr.vmem [resolvable:$true] %s184
          %190 = dma.hbm_to_vmem [thread:$0]  %s183, 1024, %s185, [#allocation6], 256, 256, 16
        $region16: #{tpu_custom_call.1} parent=11 // pred_fallthru
          _
        // Predicated region
        $region17: #{tpu_custom_call.1} parent=11 // pred_check
          %p191 = pneg %p115
        $region18: #{tpu_custom_call.1} parent=11 // pred_check_branch
          %193 = sbr.rel (%p191) target = $region20
        $region19: #{tpu_custom_call.1} parent=11 // pred_region
          %195 = vsyncadd [#allocation9], 0
          %s196 = sshll.u32 %s3, 4
          %s197 = int_to_ptr.hbm [resolvable:$true] %s196
          %s198 = sshll.u32 [#allocation8], 4
          %s199 = int_to_ptr.vmem [resolvable:$true] %s198
          %204 = dma.hbm_to_vmem [thread:$0]  %s197, 1024, %s199, [#allocation9], 256, 256, 16
        $region20: #{tpu_custom_call.1} parent=11 // pred_fallthru
          _
        // Predicated region
        $region21: #{tpu_custom_call.1} parent=11 // pred_check
          %p205 = pneg %p136
        $region22: #{tpu_custom_call.1} parent=11 // pred_check_branch
          %207 = sbr.rel (%p205) target = $region24
        $region23: #{tpu_custom_call.1} parent=11 // pred_region
          _
        $region24: #{tpu_custom_call.1} parent=11 // pred_fallthru
          _
      $region12: #{tpu_custom_call.1} parent=5 // pred_fallthru
        _
      %p208 = scmp.lt.s32.totalorder %s21, 2
      // Predicated region
      $region25: #{tpu_custom_call.1} parent=5 // pred_check
        %p209 = pneg %p208
      $region26: #{tpu_custom_call.1} parent=5 // pred_check_branch
        %211 = sbr.rel (%p209) target = $region28
      $region27: #{tpu_custom_call.1} parent=5 // pred_region
        // Predicated region
        $region29: #{tpu_custom_call.1} parent=27 // pred_check
          %p212 = pneg %p41
        $region30: #{tpu_custom_call.1} parent=27 // pred_check_branch
          %214 = sbr.rel (%p212) target = $region32
        $region31: #{tpu_custom_call.1} parent=27 // pred_region
          %s215 = sand.u32 %s31, 1
          %s216 = scalar_lea.sflag [#allocation3], %s215
          %s217 = sand.u32 %s31, 1
          %s218 = smul.addr %s217, 8
          %s219 = scalar_lea.vmem [#allocation2], %s218
          %221 = vsyncadd %s216, 0
          %s222 = smul.addr %s21, 8
          %s223 = scalar_lea.hbm %s0, %s222
          %s225 = sshll.u32 %s223, 4
          %s226 = int_to_ptr.hbm [resolvable:$true] %s225
          %s227 = sshll.u32 %s219, 4
          %s228 = int_to_ptr.vmem [resolvable:$true] %s227
          %230 = dma.hbm_to_vmem [thread:$0]  %s226, 128, %s228, %s216
        $region32: #{tpu_custom_call.1} parent=27 // pred_fallthru
          _
        // Predicated region
        $region33: #{tpu_custom_call.1} parent=27 // pred_check
          %p231 = pneg %p67
        $region34: #{tpu_custom_call.1} parent=27 // pred_check_branch
          %233 = sbr.rel (%p231) target = $region36
        $region35: #{tpu_custom_call.1} parent=27 // pred_region
          %s234 = sand.u32 %s21, 1
          %s235 = scalar_lea.sflag [#allocation6], %s234
          %s236 = sand.u32 %s57, 1
          %s237 = smul.addr %s236, 8
          %s238 = scalar_lea.vmem [#allocation5], %s237
          %240 = vsyncadd %s235, 0
          %s241 = smul.addr %s21, 8
          %s242 = scalar_lea.hbm %s1, %s241
          %s244 = sshll.u32 %s242, 4
          %s245 = int_to_ptr.hbm [resolvable:$true] %s244
          %s246 = sshll.u32 %s238, 4
          %s247 = int_to_ptr.vmem [resolvable:$true] %s246
          %249 = dma.hbm_to_vmem [thread:$0]  %s245, 128, %s247, %s235
        $region36: #{tpu_custom_call.1} parent=27 // pred_fallthru
          _
      $region28: #{tpu_custom_call.1} parent=5 // pred_fallthru
        _
      %p250 = scmp.le.s32.totalorder 1, %s21
      %p251 = scmp.lt.s32.totalorder %s21, 3
      %p252 = pnand %p250, %p251
      %p253 = pneg %p252
      // Predicated region
      $region37: #{tpu_custom_call.1} parent=5 // pred_check
        _
      $region38: #{tpu_custom_call.1} parent=5 // pred_check_branch
        %255 = sbr.rel (%p252) target = $region40
      $region39: #{tpu_custom_call.1} parent=5 // pred_region
        %s256 = ssub.s32 %s21, 1
        %s257 = sand.u32 %s34, 1
        %s258 = scalar_lea.sflag [#allocation3], %s257
        %s259 = sand.u32 %s34, 1
        %s260 = smul.addr %s259, 8
        %s261 = scalar_lea.vmem [#allocation2], %s260
        // Predicated region
        $region41: #{tpu_custom_call.1} parent=39 // pred_check
          %p262 = pneg %p47
        $region42: #{tpu_custom_call.1} parent=39 // pred_check_branch
          %264 = sbr.rel (%p262) target = $region44
        $region43: #{tpu_custom_call.1} parent=39 // pred_region
          %266 = dma.done %s258, 128
        $region44: #{tpu_custom_call.1} parent=39 // pred_fallthru
          _
        %s267 = sand.u32 %s26, 1
        %s268 = scalar_lea.sflag [#allocation6], %s267
        %s269 = sand.u32 %s60, 1
        %s270 = smul.addr %s269, 8
        %s271 = scalar_lea.vmem [#allocation5], %s270
        // Predicated region
        $region45: #{tpu_custom_call.1} parent=39 // pred_check
          %p272 = pneg %p73
        $region46: #{tpu_custom_call.1} parent=39 // pred_check_branch
          %274 = sbr.rel (%p272) target = $region48
        $region47: #{tpu_custom_call.1} parent=39 // pred_region
          %276 = dma.done %s268, 128
        $region48: #{tpu_custom_call.1} parent=39 // pred_fallthru
          _
        // Predicated region
        $region49: #{tpu_custom_call.1} parent=39 // pred_check
          %p277 = pneg %p94
        $region50: #{tpu_custom_call.1} parent=39 // pred_check_branch
          %279 = sbr.rel (%p277) target = $region52
        $region51: #{tpu_custom_call.1} parent=39 // pred_region
          %281 = dma.done [#allocation6], 1024
        $region52: #{tpu_custom_call.1} parent=39 // pred_fallthru
          _
        // Predicated region
        $region53: #{tpu_custom_call.1} parent=39 // pred_check
          %p282 = pneg %p115
        $region54: #{tpu_custom_call.1} parent=39 // pred_check_branch
          %284 = sbr.rel (%p282) target = $region56
        $region55: #{tpu_custom_call.1} parent=39 // pred_region
          %286 = dma.done [#allocation9], 1024
        $region56: #{tpu_custom_call.1} parent=39 // pred_fallthru
          _
        %s287 = sand.u32 %s34, 1
        %s288 = scalar_lea.sflag [#allocation3], %s287
        %s289 = sand.u32 %s34, 1
        %s290 = smul.addr %s289, 8
        %s291 = scalar_lea.vmem [#allocation2], %s290
        %p292 = pneg %p47
        %p293 = pneg %p44
        %s294 = sand.u32 %s26, 1
        %s295 = scalar_lea.sflag [#allocation6], %s294
        %s296 = sand.u32 %s60, 1
        %s297 = smul.addr %s296, 8
        %s298 = scalar_lea.vmem [#allocation5], %s297
        %p299 = pneg %p73
        %p300 = pneg %p70
        %p301 = pneg %p94
        %p302 = pneg %p91
        %p303 = pneg %p115
        %p304 = pneg %p112
        %p305 = pneg %p136
        %p306 = pneg %p133
        %p307 = pneg %p162
        %p308 = pneg %p159
        %s309 = sand.u32 %s149, 1
        %s310 = scalar_lea.sflag [#allocation4], %s309
        %s311 = sand.u32 %s149, 1
        %s312 = smul.addr %s311, 8
        %s313 = scalar_lea.vmem [#allocation10], %s312
        %v314 = vld [vmem:[%s261] sm:$0xff]
        %v315 = vld [vmem:[%s271] sm:$0xff]
        %v316 = vld [vmem:[#allocation7] sm:$0xff]
        %v317 = vld [vmem:[#allocation7 + $0x8] sm:$0xff]
        %v318 = vld [vmem:[#allocation7 + $0x10] sm:$0xff]
        %v319 = vld [vmem:[#allocation7 + $0x18] sm:$0xff]
        %v320 = vld [vmem:[#allocation7 + $0x20] sm:$0xff]
        %v321 = vld [vmem:[#allocation7 + $0x28] sm:$0xff]
        %v322 = vld [vmem:[#allocation7 + $0x30] sm:$0xff]
        %v323 = vld [vmem:[#allocation7 + $0x38] sm:$0xff]
        %v324 = vld [vmem:[#allocation8] sm:$0xff]
        %v325 = vld [vmem:[#allocation8 + $0x8] sm:$0xff]
        %v326 = vld [vmem:[#allocation8 + $0x10] sm:$0xff]
        %v327 = vld [vmem:[#allocation8 + $0x18] sm:$0xff]
        %v328 = vld [vmem:[#allocation8 + $0x20] sm:$0xff]
        %v329 = vld [vmem:[#allocation8 + $0x28] sm:$0xff]
        %v330 = vld [vmem:[#allocation8 + $0x30] sm:$0xff]
        %v331 = vld [vmem:[#allocation8 + $0x38] sm:$0xff]
        %vm332 = vcmask 261120
        %v334 = vsel %vm332, %v315, 0
        %336 = vmatpush.msra.mxu0 0.0
        %337 = vmatpush.msra.mxu0 0.0
        %338 = vmatpush.msra.mxu0 0.0
        %339 = vmatpush.msra.mxu0 0.0
        %340 = vmatpush.msra.mxu0 0.0
        %341 = vmatpush.msra.mxu0 0.0
        %342 = vmatpush.msra.mxu0 0.0
        %343 = vmatpush.msra.mxu0 0.0
        %344 = vmatpush.msra.mxu0 0.0
        %345 = vmatpush.msra.mxu0 0.0
        %346 = vmatpush.msra.mxu0 0.0
        %347 = vmatpush.msra.mxu0 0.0
        %348 = vmatpush.msra.mxu0 %v330
        %349 = vmatpush.msra.mxu0 %v328
        %350 = vmatpush.msra.mxu0 %v326
        %351 = vmatpush.msra.mxu0 %v324
        %352 = vmatmul.f32.gmra.mxu0 %v334
        %v353 = vpop.f32.mrf.mxu0
        %v354 = vadd.f32 0.0, %v353
        %355 = vdwg.mxu0
        %356 = vmatpush.msra.mxu0 0.0
        %357 = vmatpush.msra.mxu0 0.0
        %358 = vmatpush.msra.mxu0 0.0
        %359 = vmatpush.msra.mxu0 0.0
        %360 = vmatpush.msra.mxu0 0.0
        %361 = vmatpush.msra.mxu0 0.0
        %362 = vmatpush.msra.mxu0 0.0
        %363 = vmatpush.msra.mxu0 0.0
        %364 = vmatpush.msra.mxu0 0.0
        %365 = vmatpush.msra.mxu0 0.0
        %366 = vmatpush.msra.mxu0 0.0
        %367 = vmatpush.msra.mxu0 0.0
        %368 = vmatpush.msra.mxu0 %v331
        %369 = vmatpush.msra.mxu0 %v329
        %370 = vmatpush.msra.mxu0 %v327
        %371 = vmatpush.msra.mxu0 %v325
        %372 = vmatmul.f32.gmra.mxu0 %v334
        %v373 = vpop.f32.mrf.mxu0
        %v374 = vadd.f32 0.0, %v373
        %375 = vdwg.mxu0
        %v377 = vsel %vm332, %v314, 0
        %379 = vmatpush.msra.mxu0 0.0
        %380 = vmatpush.msra.mxu0 0.0
        %381 = vmatpush.msra.mxu0 0.0
        %382 = vmatpush.msra.mxu0 0.0
        %383 = vmatpush.msra.mxu0 0.0
        %384 = vmatpush.msra.mxu0 0.0
        %385 = vmatpush.msra.mxu0 0.0
        %386 = vmatpush.msra.mxu0 0.0
        %387 = vmatpush.msra.mxu0 0.0
        %388 = vmatpush.msra.mxu0 0.0
        %389 = vmatpush.msra.mxu0 0.0
        %390 = vmatpush.msra.mxu0 0.0
        %391 = vmatpush.msra.mxu0 %v322
        %392 = vmatpush.msra.mxu0 %v320
        %393 = vmatpush.msra.mxu0 %v318
        %394 = vmatpush.msra.mxu0 %v316
        %395 = vmatmul.f32.gmra.mxu0 %v377
        %v396 = vpop.f32.mrf.mxu0
        %v397 = vadd.f32 %v354, %v396
        %398 = vdwg.mxu0
        %399 = vmatpush.msra.mxu0 0.0
        %400 = vmatpush.msra.mxu0 0.0
        %401 = vmatpush.msra.mxu0 0.0
        %402 = vmatpush.msra.mxu0 0.0
        %403 = vmatpush.msra.mxu0 0.0
        %404 = vmatpush.msra.mxu0 0.0
        %405 = vmatpush.msra.mxu0 0.0
        %406 = vmatpush.msra.mxu0 0.0
        %407 = vmatpush.msra.mxu0 0.0
        %408 = vmatpush.msra.mxu0 0.0
        %409 = vmatpush.msra.mxu0 0.0
        %410 = vmatpush.msra.mxu0 0.0
        %411 = vmatpush.msra.mxu0 %v323
        %412 = vmatpush.msra.mxu0 %v321
        %413 = vmatpush.msra.mxu0 %v319
        %414 = vmatpush.msra.mxu0 %v317
        %415 = vmatmul.f32.gmra.mxu0 %v377
        %v416 = vpop.f32.mrf.mxu0
        %v417 = vadd.f32 %v374, %v416
        %418 = vdwg.mxu0
        %v419 = vld [vmem:[%s4] sm:$0x3]
        %v421 = vperm.slane %v419, 0
        %v422 = vperm.slane %v419, 1
        %v425 = vadd.f32 %v397, %v421
        %v426 = vadd.f32 %v417, %v422
        %v427 = vtanh.pop %v425
        %v428 = vxor.u32 %v426, 2147483648
        %v429 = vmul.f32 %v428, 1.442695
        %v430 = vpow.pop %v429
        %v431 = vadd.f32 %v430, 1.0
        %v432 = vrcp.pop %v431
        %v433 = vmul.f32 %v431, %v432
        %v434 = vsub.f32 1.0, %v433
        %v435 = vmul.f32 %v432, %v434
        %v436 = vadd.f32 %v432, %v435
        %vm437 = vweird.f32 %v431
        %vm438 = vweird.f32 %v432
        %vm439 = vmor %vm437, %vm438
        %v440 = vsel %vm439, %v432, %v436
        %v441 = vand.u32 2147483647, %v431
        %vm442 = vcmp.eq.f32.partialorder %v441, 8.507059e+37
        %v443 = vand.u32 %v431, 2147483648
        %v444 = vor.u32 1.1754944e-38, %v443
        %v445 = vsel %vm442, %v444, %v440
        %v446 = vmul.f32 1.0, %v445
        %v447 = vsub.f32 %v427, %v314
        %v448 = vmul.f32 %v446, %v447
        %v449 = vadd.f32 %v314, %v448
        %450 = vst.msk [vmem:[%s313] sm:$0xff] %vm332, %v449
        %s451 = sand.u32 %s149, 1
        %s452 = scalar_lea.sflag [#allocation4], %s451
        %s453 = sand.u32 %s149, 1
        %s454 = smul.addr %s453, 8
        %s455 = scalar_lea.vmem [#allocation10], %s454
        // Predicated region
        $region57: #{tpu_custom_call.1} parent=39 // pred_check
          %p456 = pneg %p159
        $region58: #{tpu_custom_call.1} parent=39 // pred_check_branch
          %458 = sbr.rel (%p456) target = $region60
        $region59: #{tpu_custom_call.1} parent=39 // pred_region
          %460 = vsyncadd %s452, 0
          %s461 = smul.addr %s26, 8
          %s462 = scalar_lea.hbm %s5, %s461
          %s464 = sshll.u32 %s455, 4
          %s465 = int_to_ptr.vmem [resolvable:$true] %s464
          %s466 = sshll.u32 %s462, 4
          %s467 = int_to_ptr.hbm [resolvable:$true] %s466
          %469 = dma.vmem_to_hbm [thread:$0]  %s465, 128, %s467, %s452
        $region60: #{tpu_custom_call.1} parent=39 // pred_fallthru
          _
      $region40: #{tpu_custom_call.1} parent=5 // pred_fallthru
        _
      %p470 = scmp.le.s32.totalorder 2, %s21
      // Predicated region
      $region61: #{tpu_custom_call.1} parent=5 // pred_check
        %p471 = pneg %p470
      $region62: #{tpu_custom_call.1} parent=5 // pred_check_branch
        %473 = sbr.rel (%p471) target = $region64
      $region63: #{tpu_custom_call.1} parent=5 // pred_region
        %s474 = ssub.s32 %s21, 2
        // Predicated region
        $region65: #{tpu_custom_call.1} parent=63 // pred_check
          %p475 = pneg %p165
        $region66: #{tpu_custom_call.1} parent=63 // pred_check_branch
          %477 = sbr.rel (%p475) target = $region68
        $region67: #{tpu_custom_call.1} parent=63 // pred_region
          %s478 = sand.u32 %s150, 1
          %s479 = scalar_lea.sflag [#allocation4], %s478
          %s480 = sand.u32 %s150, 1
          %s481 = smul.addr %s480, 8
          %s482 = scalar_lea.vmem [#allocation10], %s481
          %484 = dma.done %s479, 128
        $region68: #{tpu_custom_call.1} parent=63 // pred_fallthru
          _
      $region64: #{tpu_custom_call.1} parent=5 // pred_fallthru
        _
    $region6: #{tpu_custom_call.1} parent=1 // loop_footer
      %s25 = sadd.s32 1, %s21
    $region7: #{tpu_custom_call.1} parent=1 // loop_footer_branch
      %20 = sbr.rel target = $region3
    $region8: #{tpu_custom_call.1} parent=1 // loop_exit
      _
    %485 = vsyncpa [#allocation3], 1
    %s486 = scalar_lea.sflag [#allocation3], 1
    %487 = vsyncpa %s486, 1
    %488 = vsyncpa [#allocation6], 1
    %s489 = scalar_lea.sflag [#allocation6], 1
    %490 = vsyncpa %s489, 1
    %491 = vsyncpa [#allocation9], 1
    %492 = vsyncpa [#allocation4], 1
    %s493 = scalar_lea.sflag [#allocation4], 1
    %494 = vsyncpa %s493, 1

</llo_original>
